<compile_context>
chip_gen: v7x
topology: tpu7x:2x2x1
jax: 0.10.0
libtpu: 0.0.40
codegen_flags: <defaults>
</compile_context>

<pallas_src>
import functools
import math

import jax
import jax.numpy as jnp
from jax.experimental import pallas as pl
from jax.experimental.pallas import tpu as pltpu


def _round_up(x: int, m: int) -> int:
    return (x + m - 1) // m * m


# ----------------------------------------------------------------------------
# 1) EqualisedWeight.forward(): weight * c
# ----------------------------------------------------------------------------
def _eq_scale_kernel(w_ref, o_ref, *, c):
    o_ref[...] = (w_ref[...] * c).astype(o_ref.dtype)


def equalised_weight(weight):
    """weight: arbitrary-rank tensor -> weight * 1/sqrt(prod(shape[1:]))."""
    orig_shape = weight.shape
    fan_in = int(math.prod(orig_shape[1:])) if len(orig_shape) > 1 else 1
    c = 1.0 / math.sqrt(float(fan_in))

    rows = orig_shape[0]
    cols = max(fan_in, 1)
    w2 = weight.reshape(rows, cols)

    # Lane-dense, (8,128)-aligned tiles.  This is a pure HBM-bandwidth kernel, so use
    # large tiles (per-step overhead ~0.35us dominates small tiles); cap so the
    # double-buffered in+out tiles stay well inside scoped VMEM.
    tr = min(512, _round_up(rows, 8))
    tc = min(1024, _round_up(cols, 128))
    rp = _round_up(rows, tr)
    cp = _round_up(cols, tc)

    # jnp.pad with zero widths is a no-op; only unaligned shapes pay for the pad/slice.
    w2p = jnp.pad(w2, ((0, rp - rows), (0, cp - cols))) if (rp != rows or cp != cols) else w2

    itemsize = weight.dtype.itemsize
    tile_bytes = 2 * 2 * tr * tc * itemsize  # in + out, double-buffered
    vmem_limit = int(min(64 * 1024 * 1024, max(2 * tile_bytes, 8 * 1024 * 1024)))

    out = pl.pallas_call(
        functools.partial(_eq_scale_kernel, c=c),
        out_shape=jax.ShapeDtypeStruct((rp, cp), weight.dtype),
        grid_spec=pltpu.PrefetchScalarGridSpec(
            num_scalar_prefetch=0,
            grid=(rp // tr, cp // tc),
            in_specs=[pl.BlockSpec((tr, tc), lambda i, j: (i, j))],
            out_specs=pl.BlockSpec((tr, tc), lambda i, j: (i, j)),
        ),
        compiler_params=pltpu.CompilerParams(
            dimension_semantics=("parallel", "parallel"),
            vmem_limit_bytes=vmem_limit),
    )(w2p)

    if rp != rows or cp != cols:
        out = out[:rows, :cols]
    return out.reshape(orig_shape)


# ----------------------------------------------------------------------------
# 2) Fused equalised linear: y = x @ (w * c).T + b  ==  (x @ w.T) * c + b
# ----------------------------------------------------------------------------
def _eq_linear_kernel(x_ref, w_ref, b_ref, o_ref, acc_ref, *, c):
    k = pl.program_id(2)

    @pl.when(k == 0)
    def _():
        acc_ref[...] = jnp.zeros_like(acc_ref)

    # Contract the shared in-features axis directly (no in-kernel transpose):
    # x: [tm, tk], w: [tn, tk] -> [tm, tn] accumulated in f32 on the MXU.
    acc_ref[...] += jax.lax.dot_general(
        x_ref[...], w_ref[...],
        dimension_numbers=(((1,), (1,)), ((), ())),
        preferred_element_type=jnp.float32,
    )

    @pl.when(k == pl.num_programs(2) - 1)
    def _():
        # Equalised-LR scale applied once to the f32 accumulator (single FMA over
        # [tm, tn]) instead of a full [out, in] VPU multiply of the weight.
        o_ref[...] = (acc_ref[...] * c + b_ref[...].astype(jnp.float32)).astype(o_ref.dtype)


def equalised_linear(x, weight, bias, *, tm_max=256, tn_max=256, tk_max=512):
    """x: [B, in], weight: [out, in], bias: [out] -> [B, out]."""
    batch, in_features = x.shape
    out_features, in_features_w = weight.shape
    assert in_features == in_features_w
    c = 1.0 / math.sqrt(in_features)  # true fan-in; zero padding contributes nothing

    # Tile sizes: sublane-aligned batch tile, lane-dense (multiple-of-128) out/in tiles.
    tm = min(tm_max, _round_up(batch, 8))
    tn = min(tn_max, _round_up(out_features, 128))
    tk = min(tk_max, _round_up(in_features, 128))

    bp = _round_up(batch, tm)
    np_ = _round_up(out_features, tn)
    kp = _round_up(in_features, tk)

    x_p = jnp.pad(x, ((0, bp - batch), (0, kp - in_features))) \
        if (bp != batch or kp != in_features) else x
    w_p = jnp.pad(weight, ((0, np_ - out_features), (0, kp - in_features))) \
        if (np_ != out_features or kp != in_features) else weight
    b_p = jnp.pad(bias, (0, np_ - out_features)).reshape(1, np_)

    grid = (bp // tm, np_ // tn, kp // tk)
    itemsize = x.dtype.itemsize

    # Double-buffered input/output tiles + f32 accumulator scratch, plus headroom.
    tile_bytes = (2 * (tm * tk + tn * tk + tn + tm * tn) * itemsize) + tm * tn * 4
    vmem_limit = int(min(64 * 1024 * 1024, max(2 * tile_bytes, 16 * 1024 * 1024)))

    flops = 2 * batch * in_features * out_features
    bytes_accessed = (x_p.size + w_p.size + b_p.size + bp * np_) * itemsize

    out = pl.pallas_call(
        functools.partial(_eq_linear_kernel, c=c),
        out_shape=jax.ShapeDtypeStruct((bp, np_), x.dtype),
        grid_spec=pltpu.PrefetchScalarGridSpec(
            num_scalar_prefetch=0,
            grid=grid,
            in_specs=[
                pl.BlockSpec((tm, tk), lambda i, j, k: (i, k)),   # x tile
                pl.BlockSpec((tn, tk), lambda i, j, k: (j, k)),   # weight tile
                pl.BlockSpec((1, tn), lambda i, j, k: (0, j)),    # bias tile
            ],
            out_specs=pl.BlockSpec((tm, tn), lambda i, j, k: (i, j)),
            scratch_shapes=[pltpu.VMEM((tm, tn), jnp.float32)],
        ),
        compiler_params=pltpu.CompilerParams(
            dimension_semantics=("parallel", "parallel", "arbitrary"),
            vmem_limit_bytes=vmem_limit),
        cost_estimate=pl.CostEstimate(
            flops=flops, transcendentals=0, bytes_accessed=int(bytes_accessed)),
    )(x_p, w_p, b_p)

    if bp != batch or np_ != out_features:
        out = out[:batch, :out_features]
    return out


if __name__ == "__main__":
    key = jax.random.PRNGKey(0)
    k1, k2, k3, k4 = jax.random.split(key, 4)

    # --- EqualisedWeight.forward(): weight * c (conv-style 4D weight) -------
    w4 = jax.random.normal(k1, (16, 8, 3, 3), dtype=jnp.float32)
    c4 = 1.0 / math.sqrt(8 * 3 * 3)
    y4 = jax.block_until_ready(equalised_weight(w4))
    assert y4.shape == w4.shape
    assert jnp.allclose(y4, w4 * c4, atol=1e-6, rtol=1e-6)

    # --- EqualisedWeight.forward(): linear-style 2D weight ------------------
    w2d = jax.random.normal(k2, (32, 32), dtype=jnp.float32)
    y2d = jax.block_until_ready(equalised_weight(w2d))
    assert jnp.allclose(y2d, w2d * (1.0 / math.sqrt(32)), atol=1e-6, rtol=1e-6)

    # --- Fused equalised linear (aligned shapes) -----------------------------
    batch, in_features, out_features = 8, 256, 128
    x = jax.random.normal(k2, (batch, in_features), dtype=jnp.float32)
    w = jax.random.normal(k3, (out_features, in_features), dtype=jnp.float32)
    b = jnp.zeros((out_features,), dtype=jnp.float32)
    y = jax.block_until_ready(equalised_linear(x, w, b))
    c = 1.0 / math.sqrt(in_features)
    y_ref = x @ (w * c).T + b
    assert y.shape == (batch, out_features)
    assert jnp.allclose(y, y_ref, atol=5e-3, rtol=5e-3)

    # --- Non-aligned shapes exercise the padding / lane-densification path ---
    batch2, in2, out2 = 5, 40, 24
    x2 = jax.random.normal(k4, (batch2, in2), dtype=jnp.float32)
    w2 = jax.random.normal(k1, (out2, in2), dtype=jnp.float32)
    b2 = jnp.full((out2,), 0.1, dtype=jnp.float32)
    y2 = jax.block_until_ready(equalised_linear(x2, w2, b2))
    y2_ref = x2 @ (w2 * (1.0 / math.sqrt(in2))).T + b2
    assert y2.shape == (batch2, out2)
    assert jnp.allclose(y2, y2_ref, atol=5e-3, rtol=5e-3)

    print("KERNEL_OK")
</pallas_src>

<mosaic_0001>
module attributes {stable_mosaic.version = 11 : i64} {
  func.func @_eq_scale_kernel(%arg0: i32, %arg1: i32, %arg2: memref<16x128xf32, #tpu.memory_space<vmem>>, %arg3: memref<16x128xf32, #tpu.memory_space<vmem>>) attributes {dimension_semantics = [#tpu.dimension_semantics<parallel>, #tpu.dimension_semantics<parallel>], iteration_bounds = array<i64: 1, 1>, scalar_prefetch = 0 : i64, scratch_operands = 0 : i64, tpu.core_type = #tpu.core_type<tc>, window_params = [{transform_indices = @transform_0, window_bounds = array<i64: 16, 128>}, {transform_indices = @transform_1, window_bounds = array<i64: 16, 128>}]} {
    %c0 = arith.constant 0 : index
    %c0_0 = arith.constant 0 : index
    %0 = vector.load %arg2[%c0, %c0_0] : memref<16x128xf32, #tpu.memory_space<vmem>>, vector<16x128xf32>
    %cst = arith.constant 0.117851131 : f32
    %1 = vector.broadcast %cst : f32 to vector<16x128xf32>
    %2 = arith.mulf %0, %1 : vector<16x128xf32>
    %c0_1 = arith.constant 0 : index
    %c0_2 = arith.constant 0 : index
    %3 = vector.load %arg3[%c0_1, %c0_2] : memref<16x128xf32, #tpu.memory_space<vmem>>, vector<16x128xf32>
    tpu.vector_store %arg3[%c0_1, %c0_2], %2 {strides = array<i32>} : memref<16x128xf32, #tpu.memory_space<vmem>>, vector<16x128xf32>,
    return
  }
  func.func @transform_0(%arg0: i32, %arg1: i32) -> (i32, i32) {
    %c0_i32 = arith.constant 0 : i32
    return %arg0, %arg1 : i32, i32
  }
  func.func @transform_1(%arg0: i32, %arg1: i32) -> (i32, i32) {
    %c0_i32 = arith.constant 0 : i32
    return %arg0, %arg1 : i32, i32
  }
}

</mosaic_0001>

<llo_original>
// kernel: tpu_custom_call.1
$region0: #{tpu_custom_call.1}
  #allocation0 [shape = 'u32[]', space=smem, size = 0x4, offset = 0x4, fixed_abs, tag = 'smem constant byte address 0x4 - core index']
  #allocation1 [shape = 'u32[144,128]{1,0:T(1,128)}', space=vmem, size = 0x12000, scoped, tag = 'internal scratch']
  %s0 = inlined_call_operand.hbm [shape: f32[16,128], index: 0, kind: input, shape index: {}]
  %s1 = inlined_call_operand.hbm [shape: f32[16,128], index: 1, kind: output, shape index: {}]
  %s2 = sld [smem:[#allocation0]]
  $region18: #{tpu_custom_call.1} parent=0
    _
  %s4 = ssub.s32 1, %s2
  %s5 = scalar_select 0, %s4, %s2
  $region1: #{tpu_custom_call.1} parent=0
    #allocation2 [shape = 'u8[8192]{0}', space=vmem, size = 0x2000, scoped, tag = 'input window, operand 0, single buffered']
    #allocation3 [shape = 's32[1]{0}', space=sflag, size = 0x4, scoped, tag = 'scoped memory for tpu_custom_call.1']
    #allocation4 [shape = 's32[1]{0}', space=sflag, size = 0x4, scoped, tag = 'scoped memory for tpu_custom_call.1']
    #allocation5 [shape = 'u8[8192]{0}', space=vmem, size = 0x2000, scoped, tag = 'output window, operand 0, single buffered']
    %6 = vsyncpa [#allocation3], 0
    %7 = vsyncpa [#allocation4], 0
    // Predicated region
    $region2: #{tpu_custom_call.1} parent=1 // pred_check
      _
    $region3: #{tpu_custom_call.1} parent=1 // pred_check_branch
      %9 = sbr.rel (0) target = $region5
    $region4: #{tpu_custom_call.1} parent=1 // pred_region
      %s11 = ssub.s32 256, 256
      %12 = vsyncadd [#allocation3], %s11
      %s13 = sshll.u32 [#allocation2], 4
      %s14 = int_to_ptr.vmem [resolvable:$true] %s13
      %19 = dma.hbm_to_vmem [thread:$0]  %s0, 256, %s14, [#allocation3], 128, 128, 8
    $region5: #{tpu_custom_call.1} parent=1 // pred_fallthru
      _
    // Predicated region
    $region6: #{tpu_custom_call.1} parent=1 // pred_check
      _
    $region7: #{tpu_custom_call.1} parent=1 // pred_check_branch
      %21 = sbr.rel (0) target = $region9
    $region8: #{tpu_custom_call.1} parent=1 // pred_region
      %22 = dma.done [#allocation3], 256
    $region9: #{tpu_custom_call.1} parent=1 // pred_fallthru
      _
    %v23 = vld [vmem:[#allocation2] sm:$0xff]
    %v24 = vld [vmem:[#allocation2 + $0x8] sm:$0xff]
    %v25 = vmul.f32 %v23, 0.11785113
    %v26 = vmul.f32 %v24, 0.11785113
    %27 = vst [vmem:[#allocation5] sm:$0xff] %v25
    %28 = vst [vmem:[#allocation5 + $0x8] sm:$0xff] %v26
    // Predicated region
    $region10: #{tpu_custom_call.1} parent=1 // pred_check
      _
    $region11: #{tpu_custom_call.1} parent=1 // pred_check_branch
      %30 = sbr.rel (0) target = $region13
    $region12: #{tpu_custom_call.1} parent=1 // pred_region
      %s32 = ssub.s32 256, 256
      %33 = vsyncadd [#allocation4], %s32
      %s34 = sshll.u32 [#allocation5], 4
      %s35 = int_to_ptr.vmem [resolvable:$true] %s34
      %40 = dma.vmem_to_hbm [thread:$0]  %s35, 256, %s1, [#allocation4], 128, 128, 8
    $region13: #{tpu_custom_call.1} parent=1 // pred_fallthru
      _
    // Predicated region
    $region14: #{tpu_custom_call.1} parent=1 // pred_check
      _
    $region15: #{tpu_custom_call.1} parent=1 // pred_check_branch
      %42 = sbr.rel (0) target = $region17
    $region16: #{tpu_custom_call.1} parent=1 // pred_region
      %43 = dma.done [#allocation4], 256
    $region17: #{tpu_custom_call.1} parent=1 // pred_fallthru
      _
    %44 = vsyncpa [#allocation3], 1
    %45 = vsyncpa [#allocation4], 1

</llo_original>
